<compile_context>
chip_gen: v6e
topology: v6e:2x2x1
jax: 0.10.0
libtpu: 0.0.40
codegen_flags: <defaults>
</compile_context>

<pallas_src>
import functools

import jax
import jax.numpy as jnp
from jax.experimental import pallas as pl
from jax.experimental.pallas import tpu as pltpu

BN_EPS = 1e-5
SQRT_HALF = 0.7071067811865476


def _gelu_exact(x):
    # PyTorch nn.GELU default (approximate='none'): 0.5 * x * (1 + erf(x / sqrt(2)))
    return 0.5 * x * (1.0 + jax.lax.erf(x * SQRT_HALF))


def _gelu_tanh(x):
    # Optional EUP-friendly approximation (not used by default; changes numerics slightly).
    return jax.nn.gelu(x, approximate=True)


def brainfeed_kernel(x_ref,
                     w1_ref, b1_ref,
                     w2_ref, b2_ref,
                     w3_ref, b3_ref,
                     o_ref, *, gelu_fn):
    # x arrives already in bf16; weights are resident bf16; accumulate in f32.
    h = jnp.dot(x_ref[...], w1_ref[...],
                preferred_element_type=jnp.float32) + b1_ref[...]
    h = gelu_fn(h)
    h = jnp.dot(h.astype(jnp.bfloat16), w2_ref[...],
                preferred_element_type=jnp.float32) + b2_ref[...]
    h = gelu_fn(h)
    h = jnp.dot(h.astype(jnp.bfloat16), w3_ref[...],
                preferred_element_type=jnp.float32) + b3_ref[...]
    o_ref[...] = h.astype(o_ref.dtype)


def _bn_scale_shift(bn):
    gamma, beta, mean, var = bn
    s = gamma / jnp.sqrt(var + BN_EPS)
    return s, beta - mean * s


def fold_params(params, weight_dtype=jnp.bfloat16):
    """Fold all BatchNorms + scalar mul/bias into the three Linear layers (math in f32)."""
    (w1, b1), (w2, b2), (w3, b3) = params["linears"]
    s1, t1 = _bn_scale_shift(params["bns"][0])
    s2, t2 = _bn_scale_shift(params["bns"][1])
    s3, t3 = _bn_scale_shift(params["bns"][2])
    s4, t4 = _bn_scale_shift(params["bns"][3])
    mul, bias = params["mul"], params["bias"]

    # (x*s + t) @ W + b  ==  x @ (s[:,None]*W) + (t @ W + b)
    w1f, b1f = w1 * s1[:, None], t1 @ w1 + b1
    w2f, b2f = w2 * s2[:, None], t2 @ w2 + b2
    w3f, b3f = w3 * s3[:, None], t3 @ w3 + b3
    # ((h@W + b)*s4 + t4)*mul + bias  ==  h @ (W*c) + (b*c + t4*mul + bias), c = s4*mul
    c = s4 * mul
    w3f, b3f = w3f * c[None, :], b3f * c + t4 * mul + bias

    ws = [w.astype(weight_dtype) for w in (w1f, w2f, w3f)]
    bs = [b.reshape(1, -1).astype(jnp.float32) for b in (b1f, b2f, b3f)]
    return ws, bs


def _round_up(x, m):
    return ((x + m - 1) // m) * m


def _vmem_capacity_bytes():
    try:
        return int(pltpu.get_tpu_info().vmem_capacity_bytes)
    except Exception:
        return 64 << 20  # conservative default: v7x per-TensorCore VMEM


def _pick_tile_n(n, vmem_cap_bytes):
    # 128-MiB parts (v5e/v6e): 512-row tiles; 64-MiB part (v7x): 256-row tiles.
    pref = 512 if vmem_cap_bytes >= (96 << 20) else 256
    if n >= 2 * pref:
        return pref  # multiple of 256 -> MXU-sized M tiles, multi-step parallel grid
    # Small batch: aim for >= 2 grid steps (megacore sharding), rows multiple of 16 (bf16 pack).
    t = _round_up(max(pl.cdiv(n, 2), 8), 16)
    return min(t, _round_up(n, 8))


def brainfeed_forward(x, params, *, tile_n=None, out_dtype=jnp.float32,
                      approx_gelu=False):
    n, d0 = x.shape
    ws, bs = fold_params(params)
    d1, d2, dout = ws[0].shape[1], ws[1].shape[1], ws[2].shape[1]

    vmem_cap = _vmem_capacity_bytes()
    if tile_n is None:
        tile_n = _pick_tile_n(n, vmem_cap)
    tile_n = max(8, min(int(tile_n), _round_up(n, 8)))
    grid = (pl.cdiv(n, tile_n),)
    # Ragged last block (if tile_n does not divide n): Pallas reads undefined rows there and
    # discards the out-of-bounds output rows on write-back; rows are independent, so no
    # pad / slice HBM round trip is needed.

    # Stream x as bf16: cast once in XLA, halve the per-step DMA, drop the in-kernel cast.
    x = x.astype(jnp.bfloat16)

    out_itemsize = jnp.dtype(out_dtype).itemsize
    weight_bytes = (sum(int(w.size) * 2 for w in ws)
                    + sum(int(b.size) * 4 for b in bs))
    needed = (weight_bytes                          # resident weights/biases, single copy
              + 2 * tile_n * d0 * 2                 # x tile, bf16, double-buffered
              + 2 * tile_n * dout * out_itemsize    # out tile, double-buffered
              + tile_n * (d1 + d2 + dout) * 4       # f32 intermediate activations
              + tile_n * max(d1, d2) * 2)           # bf16 cast temp
    vmem_limit = int(min(max(needed * 1.25 + (8 << 20), 32 << 20),
                         0.9 * vmem_cap))           # never request more than physical VMEM

    resident = pl.BlockSpec(memory_space=pltpu.MemorySpace.VMEM)  # whole array, one copy
    in_specs = [pl.BlockSpec((tile_n, d0), lambda i: (i, 0))]     # only x streams per step
    in_specs += [resident] * 6

    cost = pl.CostEstimate(
        flops=2 * n * (d0 * d1 + d1 * d2 + d2 * dout),
        transcendentals=n * (d1 + d2),
        bytes_accessed=n * d0 * 2 + weight_bytes + n * dout * out_itemsize,
    )

    kernel = functools.partial(
        brainfeed_kernel, gelu_fn=_gelu_tanh if approx_gelu else _gelu_exact)

    return pl.pallas_call(
        kernel,
        out_shape=jax.ShapeDtypeStruct((n, dout), out_dtype),
        grid=grid,
        in_specs=in_specs,
        out_specs=pl.BlockSpec((tile_n, dout), lambda i: (i, 0)),
        compiler_params=pltpu.CompilerParams(
            dimension_semantics=("parallel",),
            vmem_limit_bytes=vmem_limit),
        cost_estimate=cost,
    )(x, ws[0], bs[0], ws[1], bs[1], ws[2], bs[2])


def brainfeed_reference_folded(x, ws, bs):
    # Mirrors the kernel math exactly (bf16 x / folded bf16 weights, f32 accumulation).
    h = jnp.dot(x.astype(jnp.bfloat16), ws[0], preferred_element_type=jnp.float32) + bs[0]
    h = _gelu_exact(h)
    h = jnp.dot(h.astype(jnp.bfloat16), ws[1], preferred_element_type=jnp.float32) + bs[1]
    h = _gelu_exact(h)
    h = jnp.dot(h.astype(jnp.bfloat16), ws[2], preferred_element_type=jnp.float32) + bs[2]
    return h


def brainfeed_reference_f32(x, params):
    # Pure-f32 eval-mode PyTorch semantics.
    (w1, b1), (w2, b2), (w3, b3) = params["linears"]

    def bn(h, p):
        s, t = _bn_scale_shift(p)
        return h * s + t

    h = bn(x, params["bns"][0])
    h = _gelu_exact(h @ w1 + b1)
    h = bn(h, params["bns"][1])
    h = _gelu_exact(h @ w2 + b2)
    h = bn(h, params["bns"][2])
    h = h @ w3 + b3
    h = bn(h, params["bns"][3])
    return h * params["mul"] + params["bias"]


def init_params(key, down_dims, out_dim):
    dims = list(down_dims) + [out_dim]          # e.g. [D0, D1, D2, 512]
    n_lin = len(dims) - 1
    keys = jax.random.split(key, 2 * n_lin + 4 * len(dims))
    ki = iter(keys)
    linears = []
    for d_in, d_out in zip(dims[:-1], dims[1:]):
        w = jax.random.normal(next(ki), (d_in, d_out), jnp.float32) / jnp.sqrt(d_in)
        b = 0.01 * jax.random.normal(next(ki), (d_out,), jnp.float32)
        linears.append((w, b))
    bns = []
    for d in dims:  # BatchNorm1d on D0, D1, D2 and the final 512
        gamma = 1.0 + 0.1 * jax.random.normal(next(ki), (d,), jnp.float32)
        beta = 0.1 * jax.random.normal(next(ki), (d,), jnp.float32)
        mean = 0.1 * jax.random.normal(next(ki), (d,), jnp.float32)
        var = jnp.abs(1.0 + 0.1 * jax.random.normal(next(ki), (d,), jnp.float32))
        bns.append((gamma, beta, mean, var))
    return {
        "linears": linears,
        "bns": bns,
        "mul": jnp.float32(1.0),   # per __init__: torch.ones(())
        "bias": jnp.float32(0.0),  # per __init__: torch.zeros(())
    }


if __name__ == "__main__":
    key = jax.random.PRNGKey(0)
    kx, kp = jax.random.split(key)
    # small-scale stand-in for the default down_dims=[4096, 2048, 1024]; final out is 512
    down_dims = [512, 256, 128]
    out_dim = 512
    batch = 64

    x = jax.random.normal(kx, (batch, down_dims[0]), jnp.float32)
    params = init_params(kp, down_dims, out_dim)

    y = jax.block_until_ready(brainfeed_forward(x, params))
    assert y.shape == (batch, out_dim)
    assert y.dtype == jnp.float32

    ws, bs = fold_params(params)
    y_mirror = brainfeed_reference_folded(x, ws, bs)   # same bf16 math as the kernel
    y_f32 = brainfeed_reference_f32(x, params)         # full-precision module semantics
    assert jnp.allclose(y, y_mirror, atol=2e-3, rtol=2e-3), \
        float(jnp.max(jnp.abs(y - y_mirror)))
    assert jnp.allclose(y, y_f32, atol=1e-1, rtol=1e-1), \
        float(jnp.max(jnp.abs(y - y_f32)))
    print("KERNEL_OK")
</pallas_src>

<mosaic_0001>
module attributes {stable_mosaic.version = 11 : i64} {
  func.func @brainfeed_kernel(%arg0: i32, %arg1: memref<32x512xbf16, #tpu.memory_space<vmem>>, %arg2: memref<512x256xbf16, #tpu.memory_space<vmem>>, %arg3: memref<1x256xf32, #tpu.memory_space<vmem>>, %arg4: memref<256x128xbf16, #tpu.memory_space<vmem>>, %arg5: memref<1x128xf32, #tpu.memory_space<vmem>>, %arg6: memref<128x512xbf16, #tpu.memory_space<vmem>>, %arg7: memref<1x512xf32, #tpu.memory_space<vmem>>, %arg8: memref<32x512xf32, #tpu.memory_space<vmem>>) attributes {dimension_semantics = [#tpu.dimension_semantics<parallel>], iteration_bounds = array<i64: 2>, scalar_prefetch = 0 : i64, scratch_operands = 0 : i64, tpu.core_type = #tpu.core_type<tc>, window_params = [{transform_indices = @transform_0, window_bounds = array<i64: 32, 512>}, {pipeline_mode = #tpu.pipeline_mode<synchronous>, transform_indices = @transform_1, window_bounds = array<i64: 512, 256>}, {pipeline_mode = #tpu.pipeline_mode<synchronous>, transform_indices = @transform_2, window_bounds = array<i64: 1, 256>}, {pipeline_mode = #tpu.pipeline_mode<synchronous>, transform_indices = @transform_3, window_bounds = array<i64: 256, 128>}, {pipeline_mode = #tpu.pipeline_mode<synchronous>, transform_indices = @transform_4, window_bounds = array<i64: 1, 128>}, {pipeline_mode = #tpu.pipeline_mode<synchronous>, transform_indices = @transform_5, window_bounds = array<i64: 128, 512>}, {pipeline_mode = #tpu.pipeline_mode<synchronous>, transform_indices = @transform_6, window_bounds = array<i64: 1, 512>}, {transform_indices = @transform_7, window_bounds = array<i64: 32, 512>}]} {
    %c0 = arith.constant 0 : index
    %c0_0 = arith.constant 0 : index
    %0 = vector.load %arg1[%c0, %c0_0] : memref<32x512xbf16, #tpu.memory_space<vmem>>, vector<32x512xbf16>
    %c0_1 = arith.constant 0 : index
    %c0_2 = arith.constant 0 : index
    %1 = vector.load %arg2[%c0_1, %c0_2] : memref<512x256xbf16, #tpu.memory_space<vmem>>, vector<512x256xbf16>
    %cst = arith.constant dense<0.000000e+00> : vector<32x256xf32>
    %2 = tpu.matmul %0, %1, %cst {dimension_numbers = #tpu.dot_dimension_numbers<[1], [0], [0], [1], [0, 0, 1, 1], [], []>} : vector<32x512xbf16>, vector<512x256xbf16>, vector<32x256xf32> -> vector<32x256xf32>
    %c0_3 = arith.constant 0 : index
    %c0_4 = arith.constant 0 : index
    %3 = vector.load %arg3[%c0_3, %c0_4] : memref<1x256xf32, #tpu.memory_space<vmem>>, vector<1x256xf32>
    %4 = vector.broadcast %3 : vector<1x256xf32> to vector<32x256xf32>
    %5 = arith.addf %2, %4 : vector<32x256xf32>
    %cst_5 = arith.constant 5.000000e-01 : f32
    %6 = vector.broadcast %cst_5 : f32 to vector<32x256xf32>
    %7 = arith.mulf %6, %5 : vector<32x256xf32>
    %cst_6 = arith.constant 0.707106769 : f32
    %8 = vector.broadcast %cst_6 : f32 to vector<32x256xf32>
    %9 = arith.mulf %5, %8 : vector<32x256xf32>
    %10 = math.erf %9 : vector<32x256xf32>
    %cst_7 = arith.constant 1.000000e+00 : f32
    %11 = vector.broadcast %cst_7 : f32 to vector<32x256xf32>
    %12 = arith.addf %11, %10 : vector<32x256xf32>
    %13 = arith.mulf %7, %12 : vector<32x256xf32>
    %14 = arith.truncf %13 : vector<32x256xf32> to vector<32x256xbf16>
    %c0_8 = arith.constant 0 : index
    %c0_9 = arith.constant 0 : index
    %15 = vector.load %arg4[%c0_8, %c0_9] : memref<256x128xbf16, #tpu.memory_space<vmem>>, vector<256x128xbf16>
    %cst_10 = arith.constant dense<0.000000e+00> : vector<32x128xf32>
    %16 = tpu.matmul %14, %15, %cst_10 {dimension_numbers = #tpu.dot_dimension_numbers<[1], [0], [0], [1], [0, 0, 1, 1], [], []>} : vector<32x256xbf16>, vector<256x128xbf16>, vector<32x128xf32> -> vector<32x128xf32>
    %c0_11 = arith.constant 0 : index
    %c0_12 = arith.constant 0 : index
    %17 = vector.load %arg5[%c0_11, %c0_12] : memref<1x128xf32, #tpu.memory_space<vmem>>, vector<1x128xf32>
    %18 = vector.broadcast %17 : vector<1x128xf32> to vector<32x128xf32>
    %19 = arith.addf %16, %18 : vector<32x128xf32>
    %cst_13 = arith.constant 5.000000e-01 : f32
    %20 = vector.broadcast %cst_13 : f32 to vector<32x128xf32>
    %21 = arith.mulf %20, %19 : vector<32x128xf32>
    %cst_14 = arith.constant 0.707106769 : f32
    %22 = vector.broadcast %cst_14 : f32 to vector<32x128xf32>
    %23 = arith.mulf %19, %22 : vector<32x128xf32>
    %24 = math.erf %23 : vector<32x128xf32>
    %cst_15 = arith.constant 1.000000e+00 : f32
    %25 = vector.broadcast %cst_15 : f32 to vector<32x128xf32>
    %26 = arith.addf %25, %24 : vector<32x128xf32>
    %27 = arith.mulf %21, %26 : vector<32x128xf32>
    %28 = arith.truncf %27 : vector<32x128xf32> to vector<32x128xbf16>
    %c0_16 = arith.constant 0 : index
    %c0_17 = arith.constant 0 : index
    %29 = vector.load %arg6[%c0_16, %c0_17] : memref<128x512xbf16, #tpu.memory_space<vmem>>, vector<128x512xbf16>
    %cst_18 = arith.constant dense<0.000000e+00> : vector<32x512xf32>
    %30 = tpu.matmul %28, %29, %cst_18 {dimension_numbers = #tpu.dot_dimension_numbers<[1], [0], [0], [1], [0, 0, 1, 1], [], []>} : vector<32x128xbf16>, vector<128x512xbf16>, vector<32x512xf32> -> vector<32x512xf32>
    %c0_19 = arith.constant 0 : index
    %c0_20 = arith.constant 0 : index
    %31 = vector.load %arg7[%c0_19, %c0_20] : memref<1x512xf32, #tpu.memory_space<vmem>>, vector<1x512xf32>
    %32 = vector.broadcast %31 : vector<1x512xf32> to vector<32x512xf32>
    %33 = arith.addf %30, %32 : vector<32x512xf32>
    %c0_21 = arith.constant 0 : index
    %c0_22 = arith.constant 0 : index
    %34 = vector.load %arg8[%c0_21, %c0_22] : memref<32x512xf32, #tpu.memory_space<vmem>>, vector<32x512xf32>
    tpu.vector_store %arg8[%c0_21, %c0_22], %33 {strides = array<i32>} : memref<32x512xf32, #tpu.memory_space<vmem>>, vector<32x512xf32>,
    return
  }
  func.func @transform_0(%arg0: i32) -> (i32, i32) {
    %c0_i32 = arith.constant 0 : i32
    %c0_i32_0 = arith.constant 0 : i32
    return %arg0, %c0_i32 : i32, i32
  }
  func.func @transform_1(%arg0: i32) -> (i32, i32) {
    %c0_i32 = arith.constant 0 : i32
    %c0_i32_0 = arith.constant 0 : i32
    %c0_i32_1 = arith.constant 0 : i32
    return %c0_i32, %c0_i32_0 : i32, i32
  }
  func.func @transform_2(%arg0: i32) -> (i32, i32) {
    %c0_i32 = arith.constant 0 : i32
    %c0_i32_0 = arith.constant 0 : i32
    %c0_i32_1 = arith.constant 0 : i32
    return %c0_i32, %c0_i32_0 : i32, i32
  }
  func.func @transform_3(%arg0: i32) -> (i32, i32) {
    %c0_i32 = arith.constant 0 : i32
    %c0_i32_0 = arith.constant 0 : i32
    %c0_i32_1 = arith.constant 0 : i32
    return %c0_i32, %c0_i32_0 : i32, i32
  }
  func.func @transform_4(%arg0: i32) -> (i32, i32) {
    %c0_i32 = arith.constant 0 : i32
    %c0_i32_0 = arith.constant 0 : i32
    %c0_i32_1 = arith.constant 0 : i32
    return %c0_i32, %c0_i32_0 : i32, i32
  }
  func.func @transform_5(%arg0: i32) -> (i32, i32) {
    %c0_i32 = arith.constant 0 : i32
    %c0_i32_0 = arith.constant 0 : i32
    %c0_i32_1 = arith.constant 0 : i32
    return %c0_i32, %c0_i32_0 : i32, i32
  }
  func.func @transform_6(%arg0: i32) -> (i32, i32) {
    %c0_i32 = arith.constant 0 : i32
    %c0_i32_0 = arith.constant 0 : i32
    %c0_i32_1 = arith.constant 0 : i32
    return %c0_i32, %c0_i32_0 : i32, i32
  }
  func.func @transform_7(%arg0: i32) -> (i32, i32) {
    %c0_i32 = arith.constant 0 : i32
    %c0_i32_0 = arith.constant 0 : i32
    return %arg0, %c0_i32 : i32, i32
  }
}

</mosaic_0001>

<llo_original>
// kernel: tpu_custom_call.1
$region0: #{tpu_custom_call.1}
  #allocation0 [shape = 'u32[]', space=smem, size = 0x4, offset = 0x4, fixed_abs, tag = 'smem constant byte address 0x4 - core index']
  #allocation1 [shape = 'u32[144,128]{1,0:T(1,128)}', space=vmem, size = 0x12000, scoped, tag = 'internal scratch']
  %s0 = inlined_call_operand.hbm [shape: bf16[64,512], index: 0, kind: input, shape index: {}]
  %s1 = inlined_call_operand.hbm [shape: bf16[512,256], index: 1, kind: input, shape index: {}]
  %s2 = inlined_call_operand.vmem [shape: f32[1,256], index: 2, kind: input, shape index: {}]
  %s3 = inlined_call_operand.hbm [shape: bf16[256,128], index: 3, kind: input, shape index: {}]
  %s4 = inlined_call_operand.vmem [shape: f32[1,128], index: 4, kind: input, shape index: {}]
  %s5 = inlined_call_operand.hbm [shape: bf16[128,512], index: 5, kind: input, shape index: {}]
  %s6 = inlined_call_operand.vmem [shape: f32[1,512], index: 6, kind: input, shape index: {}]
  %s7 = inlined_call_operand.hbm [shape: f32[64,512], index: 7, kind: output, shape index: {}]
  %s8 = sld [smem:[#allocation0]]
  $region77: #{tpu_custom_call.1} parent=0
    _
  %s10 = ssub.s32 1, %s8
  %s11 = scalar_select 0, %s10, %s8
  $region1: #{tpu_custom_call.1} parent=0
    #allocation2 [shape = 'u8[65536]{0}', space=vmem, size = 0x10000, scoped, tag = 'input window, operand 0']
    #allocation3 [shape = 's32[2]{0}', space=sflag, size = 0x8, scoped, tag = 'scoped memory for tpu_custom_call.1']
    #allocation4 [shape = 's32[2]{0}', space=sflag, size = 0x8, scoped, tag = 'scoped memory for tpu_custom_call.1']
    #allocation5 [shape = 'u8[262144]{0}', space=vmem, size = 0x40000, scoped, tag = 'input window, operand 1, single buffered']
    #allocation6 [shape = 's32[1]{0}', space=sflag, size = 0x4, scoped, tag = 'scoped memory for tpu_custom_call.1']
    #allocation7 [shape = 'u8[65536]{0}', space=vmem, size = 0x10000, scoped, tag = 'input window, operand 3, single buffered']
    #allocation8 [shape = 'u8[131072]{0}', space=vmem, size = 0x20000, scoped, tag = 'input window, operand 5, single buffered']
    #allocation9 [shape = 's32[1]{0}', space=sflag, size = 0x4, scoped, tag = 'scoped memory for tpu_custom_call.1']
    #allocation10 [shape = 'u8[131072]{0}', space=vmem, size = 0x20000, scoped, tag = 'output window, operand 0']
    %12 = vsyncpa [#allocation3], 0
    %s13 = scalar_lea.sflag [#allocation3], 1
    %14 = vsyncpa %s13, 0
    %15 = vsyncpa [#allocation6], 0
    %16 = vsyncpa [#allocation9], 0
    %17 = vsyncpa [#allocation4], 0
    %s18 = scalar_lea.sflag [#allocation4], 1
    %19 = vsyncpa %s18, 0
    loop: start=0, step=1, limit=4
    $region2: #{tpu_custom_call.1} parent=1 // loop_pre_header
      _
    $region3: #{tpu_custom_call.1} parent=1 // loop_header
      %s21 = sphi 0, %s25
      %p22 = scmp.ge.s32.totalorder %s21, 4
      %s31 = sphi 0, %s33
      %s34 = sphi 0, %s31
      %s35 = sphi 0, %s34
      %s51 = sphi 0, %s35
      %s55 = sphi 0, %s55
      %s57 = sphi 0, %s55
      %s58 = sphi 0, %s57
      %s72 = sphi 0, %s58
      %s76 = sphi 0, %s76
      %s78 = sphi 0, %s76
      %s79 = sphi 0, %s78
      %s93 = sphi 0, %s79
      %s97 = sphi 0, %s97
      %s99 = sphi 0, %s97
      %s100 = sphi 0, %s99
      %s114 = sphi 0, %s100
      %s118 = sphi 0, %s118
      %s120 = sphi 0, %s118
      %s121 = sphi 0, %s120
      %s135 = sphi 0, %s121
      %s139 = sphi 0, %s139
      %s141 = sphi 0, %s139
      %s142 = sphi 0, %s141
      %s156 = sphi 0, %s142
      %s160 = sphi 0, %s160
      %s162 = sphi 0, %s160
      %s163 = sphi 0, %s162
      %s177 = sphi 0, %s163
      %s183 = sphi 0, %s185
      %s186 = sphi 0, %s183
      %s187 = sphi 0, %s186
      %s203 = sphi 0, %s187
    $region4: #{tpu_custom_call.1} parent=1 // loop_header_branch
      %24 = sbr.rel (%p22) target = $region8
    $region5: #{tpu_custom_call.1} parent=1 // loop_body
      %s26 = ssub.s32 %s21, 1
      %s27 = ssub.s32 %s21, 2
      %s28 = sadd.s32 %s21, 1
      %s29 = ssub.s32 %s21, %s28
      %p30 = scmp.eq.s32.totalorder %s29, 0
      %s32 = sadd.s32 %s31, 1
      %s33 = scalar_select %p30, %s31, %s32
      %p36 = pneg %p30
      %p37 = scmp.eq.s32.totalorder %s21, 1
      %p38 = por %p36, %p37
      %p39 = scmp.ne.s32.totalorder %s31, %s34
      %p40 = scmp.eq.s32.totalorder %s21, 0
      %p41 = por %p39, %p40
      %p42 = scmp.ne.s32.totalorder %s31, %s34
      %p43 = scmp.eq.s32.totalorder %s26, 1
      %p44 = por %p42, %p43
      %p45 = scmp.ne.s32.totalorder %s34, %s35
      %p46 = scmp.eq.s32.totalorder %s26, 0
      %p47 = por %p45, %p46
      %p48 = scmp.ne.s32.totalorder %s34, %s35
      %p49 = scmp.eq.s32.totalorder %s27, 1
      %p50 = por %p48, %p49
      %p52 = scmp.ne.s32.totalorder %s35, %s51
      %p53 = scmp.eq.s32.totalorder %s27, 0
      %p54 = por %p52, %p53
      %s56 = sadd.s32 %s55, 1
      %p59 = scmp.eq.s32.totalorder %s21, 1
      %p60 = scmp.ne.s32.totalorder %s55, %s57
      %p61 = scmp.eq.s32.totalorder %s21, 0
      %p62 = por %p60, %p61
      %p63 = scmp.ne.s32.totalorder %s55, %s57
      %p64 = scmp.eq.s32.totalorder %s26, 1
      %p65 = por %p63, %p64
      %p66 = scmp.ne.s32.totalorder %s57, %s58
      %p67 = scmp.eq.s32.totalorder %s26, 0
      %p68 = por %p66, %p67
      %p69 = scmp.ne.s32.totalorder %s57, %s58
      %p70 = scmp.eq.s32.totalorder %s27, 1
      %p71 = por %p69, %p70
      %p73 = scmp.ne.s32.totalorder %s58, %s72
      %p74 = scmp.eq.s32.totalorder %s27, 0
      %p75 = por %p73, %p74
      %s77 = sadd.s32 %s76, 1
      %p80 = scmp.eq.s32.totalorder %s21, 1
      %p81 = scmp.ne.s32.totalorder %s76, %s78
      %p82 = scmp.eq.s32.totalorder %s21, 0
      %p83 = por %p81, %p82
      %p84 = scmp.ne.s32.totalorder %s76, %s78
      %p85 = scmp.eq.s32.totalorder %s26, 1
      %p86 = por %p84, %p85
      %p87 = scmp.ne.s32.totalorder %s78, %s79
      %p88 = scmp.eq.s32.totalorder %s26, 0
      %p89 = por %p87, %p88
      %p90 = scmp.ne.s32.totalorder %s78, %s79
      %p91 = scmp.eq.s32.totalorder %s27, 1
      %p92 = por %p90, %p91
      %p94 = scmp.ne.s32.totalorder %s79, %s93
      %p95 = scmp.eq.s32.totalorder %s27, 0
      %p96 = por %p94, %p95
      %s98 = sadd.s32 %s97, 1
      %p101 = scmp.eq.s32.totalorder %s21, 1
      %p102 = scmp.ne.s32.totalorder %s97, %s99
      %p103 = scmp.eq.s32.totalorder %s21, 0
      %p104 = por %p102, %p103
      %p105 = scmp.ne.s32.totalorder %s97, %s99
      %p106 = scmp.eq.s32.totalorder %s26, 1
      %p107 = por %p105, %p106
      %p108 = scmp.ne.s32.totalorder %s99, %s100
      %p109 = scmp.eq.s32.totalorder %s26, 0
      %p110 = por %p108, %p109
      %p111 = scmp.ne.s32.totalorder %s99, %s100
      %p112 = scmp.eq.s32.totalorder %s27, 1
      %p113 = por %p111, %p112
      %p115 = scmp.ne.s32.totalorder %s100, %s114
      %p116 = scmp.eq.s32.totalorder %s27, 0
      %p117 = por %p115, %p116
      %s119 = sadd.s32 %s118, 1
      %p122 = scmp.eq.s32.totalorder %s21, 1
      %p123 = scmp.ne.s32.totalorder %s118, %s120
      %p124 = scmp.eq.s32.totalorder %s21, 0
      %p125 = por %p123, %p124
      %p126 = scmp.ne.s32.totalorder %s118, %s120
      %p127 = scmp.eq.s32.totalorder %s26, 1
      %p128 = por %p126, %p127
      %p129 = scmp.ne.s32.totalorder %s120, %s121
      %p130 = scmp.eq.s32.totalorder %s26, 0
      %p131 = por %p129, %p130
      %p132 = scmp.ne.s32.totalorder %s120, %s121
      %p133 = scmp.eq.s32.totalorder %s27, 1
      %p134 = por %p132, %p133
      %p136 = scmp.ne.s32.totalorder %s121, %s135
      %p137 = scmp.eq.s32.totalorder %s27, 0
      %p138 = por %p136, %p137
      %s140 = sadd.s32 %s139, 1
      %p143 = scmp.eq.s32.totalorder %s21, 1
      %p144 = scmp.ne.s32.totalorder %s139, %s141
      %p145 = scmp.eq.s32.totalorder %s21, 0
      %p146 = por %p144, %p145
      %p147 = scmp.ne.s32.totalorder %s139, %s141
      %p148 = scmp.eq.s32.totalorder %s26, 1
      %p149 = por %p147, %p148
      %p150 = scmp.ne.s32.totalorder %s141, %s142
      %p151 = scmp.eq.s32.totalorder %s26, 0
      %p152 = por %p150, %p151
      %p153 = scmp.ne.s32.totalorder %s141, %s142
      %p154 = scmp.eq.s32.totalorder %s27, 1
      %p155 = por %p153, %p154
      %p157 = scmp.ne.s32.totalorder %s142, %s156
      %p158 = scmp.eq.s32.totalorder %s27, 0
      %p159 = por %p157, %p158
      %s161 = sadd.s32 %s160, 1
      %p164 = scmp.eq.s32.totalorder %s21, 1
      %p165 = scmp.ne.s32.totalorder %s160, %s162
      %p166 = scmp.eq.s32.totalorder %s21, 0
      %p167 = por %p165, %p166
      %p168 = scmp.ne.s32.totalorder %s160, %s162
      %p169 = scmp.eq.s32.totalorder %s26, 1
      %p170 = por %p168, %p169
      %p171 = scmp.ne.s32.totalorder %s162, %s163
      %p172 = scmp.eq.s32.totalorder %s26, 0
      %p173 = por %p171, %p172
      %p174 = scmp.ne.s32.totalorder %s162, %s163
      %p175 = scmp.eq.s32.totalorder %s27, 1
      %p176 = por %p174, %p175
      %p178 = scmp.ne.s32.totalorder %s163, %s177
      %p179 = scmp.eq.s32.totalorder %s27, 0
      %p180 = por %p178, %p179
      %s181 = ssub.s32 %s21, %s28
      %p182 = scmp.eq.s32.totalorder %s181, 0
      %s184 = sadd.s32 %s183, 1
      %s185 = scalar_select %p182, %s183, %s184
      %p188 = pneg %p182
      %p189 = scmp.eq.s32.totalorder %s21, 1
      %p190 = por %p188, %p189
      %p191 = scmp.ne.s32.totalorder %s183, %s186
      %p192 = scmp.eq.s32.totalorder %s21, 0
      %p193 = por %p191, %p192
      %p194 = scmp.ne.s32.totalorder %s183, %s186
      %p195 = scmp.eq.s32.totalorder %s26, 1
      %p196 = por %p194, %p195
      %p197 = scmp.ne.s32.totalorder %s186, %s187
      %p198 = scmp.eq.s32.totalorder %s26, 0
      %p199 = por %p197, %p198
      %p200 = scmp.ne.s32.totalorder %s186, %s187
      %p201 = scmp.eq.s32.totalorder %s27, 1
      %p202 = por %p200, %p201
      %p204 = scmp.ne.s32.totalorder %s187, %s203
      %p205 = scmp.eq.s32.totalorder %s27, 0
      %p206 = por %p204, %p205
      %p207 = scmp.le.s32.totalorder 1, %s21
      %p208 = scmp.lt.s32.totalorder %s21, 3
      %p209 = pnand %p207, %p208
      %p210 = pneg %p209
      // Predicated region
      $region9: #{tpu_custom_call.1} parent=5 // pred_check
        _
      $region10: #{tpu_custom_call.1} parent=5 // pred_check_branch
        %212 = sbr.rel (%p209) target = $region12
      $region11: #{tpu_custom_call.1} parent=5 // pred_region
        %s213 = ssub.s32 %s21, 1
        // Predicated region
        $region13: #{tpu_custom_call.1} parent=11 // pred_check
          %p214 = pneg %p68
        $region14: #{tpu_custom_call.1} parent=11 // pred_check_branch
          %216 = sbr.rel (%p214) target = $region16
        $region15: #{tpu_custom_call.1} parent=11 // pred_region
          %s218 = ssub.s32 8192, 8192
          %219 = vsyncadd [#allocation6], %s218
          %s220 = sshll.u32 [#allocation5], 4
          %s221 = int_to_ptr.vmem [resolvable:$true] %s220
          %226 = dma.hbm_to_vmem [thread:$0]  %s1, 8192, %s221, [#allocation6], 128, 128, 8
        $region16: #{tpu_custom_call.1} parent=11 // pred_fallthru
          _
        // Predicated region
        $region17: #{tpu_custom_call.1} parent=11 // pred_check
          %p227 = pneg %p89
        $region18: #{tpu_custom_call.1} parent=11 // pred_check_branch
          %229 = sbr.rel (%p227) target = $region20
        $region19: #{tpu_custom_call.1} parent=11 // pred_region
          _
        $region20: #{tpu_custom_call.1} parent=11 // pred_fallthru
          _
        // Predicated region
        $region21: #{tpu_custom_call.1} parent=11 // pred_check
          %p230 = pneg %p110
        $region22: #{tpu_custom_call.1} parent=11 // pred_check_branch
          %232 = sbr.rel (%p230) target = $region24
        $region23: #{tpu_custom_call.1} parent=11 // pred_region
          %s234 = ssub.s32 2048, 2048
          %235 = vsyncadd [#allocation6], %s234
          %s236 = sshll.u32 [#allocation7], 4
          %s237 = int_to_ptr.vmem [resolvable:$true] %s236
          %242 = dma.hbm_to_vmem [thread:$0]  %s3, 2048, %s237, [#allocation6], 64, 64, 4
        $region24: #{tpu_custom_call.1} parent=11 // pred_fallthru
          _
        // Predicated region
        $region25: #{tpu_custom_call.1} parent=11 // pred_check
          %p243 = pneg %p131
        $region26: #{tpu_custom_call.1} parent=11 // pred_check_branch
          %245 = sbr.rel (%p243) target = $region28
        $region27: #{tpu_custom_call.1} parent=11 // pred_region
          _
        $region28: #{tpu_custom_call.1} parent=11 // pred_fallthru
          _
        // Predicated region
        $region29: #{tpu_custom_call.1} parent=11 // pred_check
          %p246 = pneg %p152
        $region30: #{tpu_custom_call.1} parent=11 // pred_check_branch
          %248 = sbr.rel (%p246) target = $region32
        $region31: #{tpu_custom_call.1} parent=11 // pred_region
          %s250 = ssub.s32 4096, 4096
          %251 = vsyncadd [#allocation9], %s250
          %s252 = sshll.u32 [#allocation8], 4
          %s253 = int_to_ptr.vmem [resolvable:$true] %s252
          %258 = dma.hbm_to_vmem [thread:$0]  %s5, 4096, %s253, [#allocation9], 256, 256, 16
        $region32: #{tpu_custom_call.1} parent=11 // pred_fallthru
          _
        // Predicated region
        $region33: #{tpu_custom_call.1} parent=11 // pred_check
          %p259 = pneg %p173
        $region34: #{tpu_custom_call.1} parent=11 // pred_check_branch
          %261 = sbr.rel (%p259) target = $region36
        $region35: #{tpu_custom_call.1} parent=11 // pred_region
          _
        $region36: #{tpu_custom_call.1} parent=11 // pred_fallthru
          _
      $region12: #{tpu_custom_call.1} parent=5 // pred_fallthru
        _
      %p262 = scmp.lt.s32.totalorder %s21, 2
      // Predicated region
      $region37: #{tpu_custom_call.1} parent=5 // pred_check
        %p263 = pneg %p262
      $region38: #{tpu_custom_call.1} parent=5 // pred_check_branch
        %265 = sbr.rel (%p263) target = $region40
      $region39: #{tpu_custom_call.1} parent=5 // pred_region
        // Predicated region
        $region41: #{tpu_custom_call.1} parent=39 // pred_check
          %p266 = pneg %p41
        $region42: #{tpu_custom_call.1} parent=39 // pred_check_branch
          %268 = sbr.rel (%p266) target = $region44
        $region43: #{tpu_custom_call.1} parent=39 // pred_region
          %s269 = sand.u32 %s31, 1
          %s270 = scalar_lea.sflag [#allocation3], %s269
          %s271 = sand.u32 %s31, 1
          %s272 = smul.addr %s271, 64
          %s273 = scalar_lea.vmem [#allocation2], %s272
          %s274 = smul.u32 4, %s21
          %s276 = ssub.s32 1024, 1024
          %277 = vsyncadd %s270, %s276
          %s278 = smul.addr %s274, 4
          %s279 = smul.addr %s278, 64
          %s280 = scalar_lea.hbm %s0, %s279
          %s281 = sshll.u32 %s273, 4
          %s282 = int_to_ptr.vmem [resolvable:$true] %s281
          %287 = dma.hbm_to_vmem [thread:$0]  %s280, 1024, %s282, %s270, 256, 256, 16
        $region44: #{tpu_custom_call.1} parent=39 // pred_fallthru
          _
      $region40: #{tpu_custom_call.1} parent=5 // pred_fallthru
        _
      %p288 = scmp.le.s32.totalorder 1, %s21
      %p289 = scmp.lt.s32.totalorder %s21, 3
      %p290 = pnand %p288, %p289
      %p291 = pneg %p290
      // Predicated region
      $region45: #{tpu_custom_call.1} parent=5 // pred_check
        _
      $region46: #{tpu_custom_call.1} parent=5 // pred_check_branch
        %293 = sbr.rel (%p290) target = $region48
      $region47: #{tpu_custom_call.1} parent=5 // pred_region
        %s294 = ssub.s32 %s21, 1
        %s295 = sand.u32 %s34, 1
        %s296 = scalar_lea.sflag [#allocation3], %s295
        %s297 = sand.u32 %s34, 1
        %s298 = smul.addr %s297, 64
        %s299 = scalar_lea.vmem [#allocation2], %s298
        // Predicated region
        $region49: #{tpu_custom_call.1} parent=47 // pred_check
          %p300 = pneg %p47
        $region50: #{tpu_custom_call.1} parent=47 // pred_check_branch
          %302 = sbr.rel (%p300) target = $region52
        $region51: #{tpu_custom_call.1} parent=47 // pred_region
          %303 = dma.done %s296, 1024
        $region52: #{tpu_custom_call.1} parent=47 // pred_fallthru
          _
        // Predicated region
        $region53: #{tpu_custom_call.1} parent=47 // pred_check
          %p304 = pneg %p68
        $region54: #{tpu_custom_call.1} parent=47 // pred_check_branch
          %306 = sbr.rel (%p304) target = $region56
        $region55: #{tpu_custom_call.1} parent=47 // pred_region
          %307 = dma.done [#allocation6], 8192
        $region56: #{tpu_custom_call.1} parent=47 // pred_fallthru
          _
        // Predicated region
        $region57: #{tpu_custom_call.1} parent=47 // pred_check
          %p308 = pneg %p110
        $region58: #{tpu_custom_call.1} parent=47 // pred_check_branch
          %310 = sbr.rel (%p308) target = $region60
        $region59: #{tpu_custom_call.1} parent=47 // pred_region
          %311 = dma.done [#allocation6], 2048
        $region60: #{tpu_custom_call.1} parent=47 // pred_fallthru
          _
        // Predicated region
        $region61: #{tpu_custom_call.1} parent=47 // pred_check
          %p312 = pneg %p152
        $region62: #{tpu_custom_call.1} parent=47 // pred_check_branch
          %314 = sbr.rel (%p312) target = $region64
        $region63: #{tpu_custom_call.1} parent=47 // pred_region
          %315 = dma.done [#allocation9], 4096
        $region64: #{tpu_custom_call.1} parent=47 // pred_fallthru
          _
        %s316 = sand.u32 %s34, 1
        %s317 = scalar_lea.sflag [#allocation3], %s316
        %s318 = sand.u32 %s34, 1
        %s319 = smul.addr %s318, 64
        %s320 = scalar_lea.vmem [#allocation2], %s319
        %p321 = pneg %p47
        %p322 = pneg %p44
        %p323 = pneg %p68
        %p324 = pneg %p65
        %p325 = pneg %p89
        %p326 = pneg %p86
        %p327 = pneg %p110
        %p328 = pneg %p107
        %p329 = pneg %p131
        %p330 = pneg %p128
        %p331 = pneg %p152
        %p332 = pneg %p149
        %p333 = pneg %p173
        %p334 = pneg %p170
        %p335 = pneg %p199
        %p336 = pneg %p196
        %s337 = sand.u32 %s186, 1
        %s338 = scalar_lea.sflag [#allocation4], %s337
        %s339 = sand.u32 %s186, 1
        %s340 = smul.addr %s339, 128
        %s341 = scalar_lea.vmem [#allocation10], %s340
        %s342 = smul.u32 4, %s26
        %s343 = smul.u32 4, %s26
        %v345 = vld [vmem:[%s299] sm:$0xff]
        %v346 = vld [vmem:[%s299 + $0x8] sm:$0xff]
        %v347 = vld [vmem:[%s299 + $0x10] sm:$0xff]
        %v348 = vld [vmem:[%s299 + $0x18] sm:$0xff]
        %v349 = vld [vmem:[%s299 + $0x20] sm:$0xff]
        %v350 = vld [vmem:[%s299 + $0x28] sm:$0xff]
        %v351 = vld [vmem:[%s299 + $0x30] sm:$0xff]
        %v352 = vld [vmem:[%s299 + $0x38] sm:$0xff]
        %v353 = vld [vmem:[#allocation5] sm:$0xff]
        %v354 = vld [vmem:[#allocation5 + $0x8] sm:$0xff]
        %v355 = vld [vmem:[#allocation5 + $0x10] sm:$0xff]
        %v356 = vld [vmem:[#allocation5 + $0x18] sm:$0xff]
        %v357 = vld [vmem:[#allocation5 + $0x20] sm:$0xff]
        %v358 = vld [vmem:[#allocation5 + $0x28] sm:$0xff]
        %v359 = vld [vmem:[#allocation5 + $0x30] sm:$0xff]
        %v360 = vld [vmem:[#allocation5 + $0x38] sm:$0xff]
        %v361 = vld [vmem:[#allocation5 + $0x40] sm:$0xff]
        %v362 = vld [vmem:[#allocation5 + $0x48] sm:$0xff]
        %v363 = vld [vmem:[#allocation5 + $0x50] sm:$0xff]
        %v364 = vld [vmem:[#allocation5 + $0x58] sm:$0xff]
        %v365 = vld [vmem:[#allocation5 + $0x60] sm:$0xff]
        %v366 = vld [vmem:[#allocation5 + $0x68] sm:$0xff]
        %v367 = vld [vmem:[#allocation5 + $0x70] sm:$0xff]
        %v368 = vld [vmem:[#allocation5 + $0x78] sm:$0xff]
        %v369 = vld [vmem:[#allocation5 + $0x80] sm:$0xff]
        %v370 = vld [vmem:[#allocation5 + $0x88] sm:$0xff]
        %v371 = vld [vmem:[#allocation5 + $0x90] sm:$0xff]
        %v372 = vld [vmem:[#allocation5 + $0x98] sm:$0xff]
        %v373 = vld [vmem:[#allocation5 + $0xa0] sm:$0xff]
        %v374 = vld [vmem:[#allocation5 + $0xa8] sm:$0xff]
        %v375 = vld [vmem:[#allocation5 + $0xb0] sm:$0xff]
        %v376 = vld [vmem:[#allocation5 + $0xb8] sm:$0xff]
        %v377 = vld [vmem:[#allocation5 + $0xc0] sm:$0xff]
        %v378 = vld [vmem:[#allocation5 + $0xc8] sm:$0xff]
        %v379 = vld [vmem:[#allocation5 + $0xd0] sm:$0xff]
        %v380 = vld [vmem:[#allocation5 + $0xd8] sm:$0xff]
        %v381 = vld [vmem:[#allocation5 + $0xe0] sm:$0xff]
        %v382 = vld [vmem:[#allocation5 + $0xe8] sm:$0xff]
        %v383 = vld [vmem:[#allocation5 + $0xf0] sm:$0xff]
        %v384 = vld [vmem:[#allocation5 + $0xf8] sm:$0xff]
        %v385 = vld [vmem:[#allocation5 + $0x100] sm:$0xff]
        %v386 = vld [vmem:[#allocation5 + $0x108] sm:$0xff]
        %v387 = vld [vmem:[#allocation5 + $0x110] sm:$0xff]
        %v388 = vld [vmem:[#allocation5 + $0x118] sm:$0xff]
        %v389 = vld [vmem:[#allocation5 + $0x120] sm:$0xff]
        %v390 = vld [vmem:[#allocation5 + $0x128] sm:$0xff]
        %v391 = vld [vmem:[#allocation5 + $0x130] sm:$0xff]
        %v392 = vld [vmem:[#allocation5 + $0x138] sm:$0xff]
        %v393 = vld [vmem:[#allocation5 + $0x140] sm:$0xff]
        %v394 = vld [vmem:[#allocation5 + $0x148] sm:$0xff]
        %v395 = vld [vmem:[#allocation5 + $0x150] sm:$0xff]
        %v396 = vld [vmem:[#allocation5 + $0x158] sm:$0xff]
        %v397 = vld [vmem:[#allocation5 + $0x160] sm:$0xff]
        %v398 = vld [vmem:[#allocation5 + $0x168] sm:$0xff]
        %v399 = vld [vmem:[#allocation5 + $0x170] sm:$0xff]
        %v400 = vld [vmem:[#allocation5 + $0x178] sm:$0xff]
        %v401 = vld [vmem:[#allocation5 + $0x180] sm:$0xff]
        %v402 = vld [vmem:[#allocation5 + $0x188] sm:$0xff]
        %v403 = vld [vmem:[#allocation5 + $0x190] sm:$0xff]
        %v404 = vld [vmem:[#allocation5 + $0x198] sm:$0xff]
        %v405 = vld [vmem:[#allocation5 + $0x1a0] sm:$0xff]
        %v406 = vld [vmem:[#allocation5 + $0x1a8] sm:$0xff]
        %v407 = vld [vmem:[#allocation5 + $0x1b0] sm:$0xff]
        %v408 = vld [vmem:[#allocation5 + $0x1b8] sm:$0xff]
        %v409 = vld [vmem:[#allocation5 + $0x1c0] sm:$0xff]
        %v410 = vld [vmem:[#allocation5 + $0x1c8] sm:$0xff]
        %v411 = vld [vmem:[#allocation5 + $0x1d0] sm:$0xff]
        %v412 = vld [vmem:[#allocation5 + $0x1d8] sm:$0xff]
        %v413 = vld [vmem:[#allocation5 + $0x1e0] sm:$0xff]
        %v414 = vld [vmem:[#allocation5 + $0x1e8] sm:$0xff]
        %v415 = vld [vmem:[#allocation5 + $0x1f0] sm:$0xff]
        %v416 = vld [vmem:[#allocation5 + $0x1f8] sm:$0xff]
        %v417 = vld [vmem:[%s2] sm:$0x3]
        %v419 = vlaneseq
        %v420 = vshrl.u32 %v419, 7
        %v421 = vsub.s32 0, %v420
        %v422 = vrot.slane %v417, %v421
        %v423 = vlaneseq
        %v424 = vshrl.u32 %v423, 7
        %v425 = vsub.s32 1, %v424
        %v426 = vrot.slane %v417, %v425
        %v437 = vunpack.c.l.b16 %v345
        %v438 = vunpack.c.h.b16 %v345
        %v439 = vunpack.c.l.b16 %v346
        %v440 = vunpack.c.h.b16 %v346
        %v441 = vunpack.c.l.b16 %v347
        %v442 = vunpack.c.h.b16 %v347
        %v443 = vunpack.c.l.b16 %v348
        %v444 = vunpack.c.h.b16 %v348
        %v445 = vunpack.c.l.b16 %v349
        %v446 = vunpack.c.h.b16 %v349
        %v447 = vunpack.c.l.b16 %v350
        %v448 = vunpack.c.h.b16 %v350
        %v449 = vunpack.c.l.b16 %v351
        %v450 = vunpack.c.h.b16 %v351
        %v451 = vunpack.c.l.b16 %v352
        %v452 = vunpack.c.h.b16 %v352
        %v453 = vpack.c.b16 %v441, %v437
        %v454 = vpack.c.b16 %v442, %v438
        %v455 = vpack.c.b16 %v443, %v439
        %v456 = vpack.c.b16 %v444, %v440
        %v457 = vpack.c.b16 %v449, %v445
        %v458 = vpack.c.b16 %v450, %v446
        %v459 = vpack.c.b16 %v451, %v447
        %v460 = vpack.c.b16 %v452, %v448
        %v533 = vunpack.c.l.b16 %v353
        %v534 = vunpack.c.h.b16 %v353
        %v535 = vunpack.c.l.b16 %v354
        %v536 = vunpack.c.h.b16 %v354
        %v537 = vunpack.c.l.b16 %v355
        %v538 = vunpack.c.h.b16 %v355
        %v539 = vunpack.c.l.b16 %v356
        %v540 = vunpack.c.h.b16 %v356
        %v541 = vunpack.c.l.b16 %v357
        %v542 = vunpack.c.h.b16 %v357
        %v543 = vunpack.c.l.b16 %v358
        %v544 = vunpack.c.h.b16 %v358
        %v545 = vunpack.c.l.b16 %v359
        %v546 = vunpack.c.h.b16 %v359
        %v547 = vunpack.c.l.b16 %v360
        %v548 = vunpack.c.h.b16 %v360
        %v549 = vunpack.c.l.b16 %v361
        %v550 = vunpack.c.h.b16 %v361
        %v551 = vunpack.c.l.b16 %v362
        %v552 = vunpack.c.h.b16 %v362
        %v553 = vunpack.c.l.b16 %v363
        %v554 = vunpack.c.h.b16 %v363
        %v555 = vunpack.c.l.b16 %v364
        %v556 = vunpack.c.h.b16 %v364
        %v557 = vunpack.c.l.b16 %v365
        %v558 = vunpack.c.h.b16 %v365
        %v559 = vunpack.c.l.b16 %v366
        %v560 = vunpack.c.h.b16 %v366
        %v561 = vunpack.c.l.b16 %v367
        %v562 = vunpack.c.h.b16 %v367
        %v563 = vunpack.c.l.b16 %v368
        %v564 = vunpack.c.h.b16 %v368
        %v565 = vunpack.c.l.b16 %v369
        %v566 = vunpack.c.h.b16 %v369
        %v567 = vunpack.c.l.b16 %v370
        %v568 = vunpack.c.h.b16 %v370
        %v569 = vunpack.c.l.b16 %v371
        %v570 = vunpack.c.h.b16 %v371
        %v571 = vunpack.c.l.b16 %v372
        %v572 = vunpack.c.h.b16 %v372
        %v573 = vunpack.c.l.b16 %v373
        %v574 = vunpack.c.h.b16 %v373
        %v575 = vunpack.c.l.b16 %v374
        %v576 = vunpack.c.h.b16 %v374
        %v577 = vunpack.c.l.b16 %v375
        %v578 = vunpack.c.h.b16 %v375
        %v579 = vunpack.c.l.b16 %v376
        %v580 = vunpack.c.h.b16 %v376
        %v581 = vunpack.c.l.b16 %v377
        %v582 = vunpack.c.h.b16 %v377
        %v583 = vunpack.c.l.b16 %v378
        %v584 = vunpack.c.h.b16 %v378
        %v585 = vunpack.c.l.b16 %v379
        %v586 = vunpack.c.h.b16 %v379
        %v587 = vunpack.c.l.b16 %v380
        %v588 = vunpack.c.h.b16 %v380
        %v589 = vunpack.c.l.b16 %v381
        %v590 = vunpack.c.h.b16 %v381
        %v591 = vunpack.c.l.b16 %v382
        %v592 = vunpack.c.h.b16 %v382
        %v593 = vunpack.c.l.b16 %v383
        %v594 = vunpack.c.h.b16 %v383
        %v595 = vunpack.c.l.b16 %v384
        %v596 = vunpack.c.h.b16 %v384
        %v597 = vunpack.c.l.b16 %v385
        %v598 = vunpack.c.h.b16 %v385
        %v599 = vunpack.c.l.b16 %v386
        %v600 = vunpack.c.h.b16 %v386
        %v601 = vunpack.c.l.b16 %v387
        %v602 = vunpack.c.h.b16 %v387
        %v603 = vunpack.c.l.b16 %v388
        %v604 = vunpack.c.h.b16 %v388
        %v605 = vunpack.c.l.b16 %v389
        %v606 = vunpack.c.h.b16 %v389
        %v607 = vunpack.c.l.b16 %v390
        %v608 = vunpack.c.h.b16 %v390
        %v609 = vunpack.c.l.b16 %v391
        %v610 = vunpack.c.h.b16 %v391
        %v611 = vunpack.c.l.b16 %v392
        %v612 = vunpack.c.h.b16 %v392
        %v613 = vunpack.c.l.b16 %v393
        %v614 = vunpack.c.h.b16 %v393
        %v615 = vunpack.c.l.b16 %v394
        %v616 = vunpack.c.h.b16 %v394
        %v617 = vunpack.c.l.b16 %v395
        %v618 = vunpack.c.h.b16 %v395
        %v619 = vunpack.c.l.b16 %v396
        %v620 = vunpack.c.h.b16 %v396
        %v621 = vunpack.c.l.b16 %v397
        %v622 = vunpack.c.h.b16 %v397
        %v623 = vunpack.c.l.b16 %v398
        %v624 = vunpack.c.h.b16 %v398
        %v625 = vunpack.c.l.b16 %v399
        %v626 = vunpack.c.h.b16 %v399
        %v627 = vunpack.c.l.b16 %v400
        %v628 = vunpack.c.h.b16 %v400
        %v629 = vunpack.c.l.b16 %v401
        %v630 = vunpack.c.h.b16 %v401
        %v631 = vunpack.c.l.b16 %v402
        %v632 = vunpack.c.h.b16 %v402
        %v633 = vunpack.c.l.b16 %v403
        %v634 = vunpack.c.h.b16 %v403
        %v635 = vunpack.c.l.b16 %v404
        %v636 = vunpack.c.h.b16 %v404
        %v637 = vunpack.c.l.b16 %v405
        %v638 = vunpack.c.h.b16 %v405
        %v639 = vunpack.c.l.b16 %v406
        %v640 = vunpack.c.h.b16 %v406
        %v641 = vunpack.c.l.b16 %v407
        %v642 = vunpack.c.h.b16 %v407
        %v643 = vunpack.c.l.b16 %v408
        %v644 = vunpack.c.h.b16 %v408
        %v645 = vunpack.c.l.b16 %v409
        %v646 = vunpack.c.h.b16 %v409
        %v647 = vunpack.c.l.b16 %v410
        %v648 = vunpack.c.h.b16 %v410
        %v649 = vunpack.c.l.b16 %v411
        %v650 = vunpack.c.h.b16 %v411
        %v651 = vunpack.c.l.b16 %v412
        %v652 = vunpack.c.h.b16 %v412
        %v653 = vunpack.c.l.b16 %v413
        %v654 = vunpack.c.h.b16 %v413
        %v655 = vunpack.c.l.b16 %v414
        %v656 = vunpack.c.h.b16 %v414
        %v657 = vunpack.c.l.b16 %v415
        %v658 = vunpack.c.h.b16 %v415
        %v659 = vunpack.c.l.b16 %v416
        %v660 = vunpack.c.h.b16 %v416
        %v661 = vpack.c.b16 %v535, %v533
        %v662 = vpack.c.b16 %v536, %v534
        %v663 = vpack.c.b16 %v539, %v537
        %v664 = vpack.c.b16 %v540, %v538
        %v665 = vpack.c.b16 %v543, %v541
        %v666 = vpack.c.b16 %v544, %v542
        %v667 = vpack.c.b16 %v547, %v545
        %v668 = vpack.c.b16 %v548, %v546
        %v669 = vpack.c.b16 %v551, %v549
        %v670 = vpack.c.b16 %v552, %v550
        %v671 = vpack.c.b16 %v555, %v553
        %v672 = vpack.c.b16 %v556, %v554
        %v673 = vpack.c.b16 %v559, %v557
        %v674 = vpack.c.b16 %v560, %v558
        %v675 = vpack.c.b16 %v563, %v561
        %v676 = vpack.c.b16 %v564, %v562
        %v677 = vpack.c.b16 %v567, %v565
        %v678 = vpack.c.b16 %v568, %v566
        %v679 = vpack.c.b16 %v571, %v569
        %v680 = vpack.c.b16 %v572, %v570
        %v681 = vpack.c.b16 %v575, %v573
        %v682 = vpack.c.b16 %v576, %v574
        %v683 = vpack.c.b16 %v579, %v577
        %v684 = vpack.c.b16 %v580, %v578
        %v685 = vpack.c.b16 %v583, %v581
        %v686 = vpack.c.b16 %v584, %v582
        %v687 = vpack.c.b16 %v587, %v585
        %v688 = vpack.c.b16 %v588, %v586
        %v689 = vpack.c.b16 %v591, %v589
        %v690 = vpack.c.b16 %v592, %v590
        %v691 = vpack.c.b16 %v595, %v593
        %v692 = vpack.c.b16 %v596, %v594
        %v693 = vpack.c.b16 %v599, %v597
        %v694 = vpack.c.b16 %v600, %v598
        %v695 = vpack.c.b16 %v603, %v601
        %v696 = vpack.c.b16 %v604, %v602
        %v697 = vpack.c.b16 %v607, %v605
        %v698 = vpack.c.b16 %v608, %v606
        %v699 = vpack.c.b16 %v611, %v609
        %v700 = vpack.c.b16 %v612, %v610
        %v701 = vpack.c.b16 %v615, %v613
        %v702 = vpack.c.b16 %v616, %v614
        %v703 = vpack.c.b16 %v619, %v617
        %v704 = vpack.c.b16 %v620, %v618
        %v705 = vpack.c.b16 %v623, %v621
        %v706 = vpack.c.b16 %v624, %v622
        %v707 = vpack.c.b16 %v627, %v625
        %v708 = vpack.c.b16 %v628, %v626
        %v709 = vpack.c.b16 %v631, %v629
        %v710 = vpack.c.b16 %v632, %v630
        %v711 = vpack.c.b16 %v635, %v633
        %v712 = vpack.c.b16 %v636, %v634
        %v713 = vpack.c.b16 %v639, %v637
        %v714 = vpack.c.b16 %v640, %v638
        %v715 = vpack.c.b16 %v643, %v641
        %v716 = vpack.c.b16 %v644, %v642
        %v717 = vpack.c.b16 %v647, %v645
        %v718 = vpack.c.b16 %v648, %v646
        %v719 = vpack.c.b16 %v651, %v649
        %v720 = vpack.c.b16 %v652, %v650
        %v721 = vpack.c.b16 %v655, %v653
        %v722 = vpack.c.b16 %v656, %v654
        %v723 = vpack.c.b16 %v659, %v657
        %v724 = vpack.c.b16 %v660, %v658
        %789 = vmatprep.subr.bf16.mxu0 %v676
        %790 = vmatpush1.bf16.msra.mxu0 %v675
        %791 = vmatprep.subr.bf16.mxu0 %v674
        %792 = vmatpush1.bf16.msra.mxu0 %v673
        %793 = vmatprep.subr.bf16.mxu0 %v672
        %794 = vmatpush1.bf16.msra.mxu0 %v671
        %795 = vmatprep.subr.bf16.mxu0 %v670
        %796 = vmatpush1.bf16.msra.mxu0 %v669
        %797 = vmatprep.subr.bf16.mxu0 %v668
        %798 = vmatpush1.bf16.msra.mxu0 %v667
        %799 = vmatprep.subr.bf16.mxu0 %v666
        %800 = vmatpush1.bf16.msra.mxu0 %v665
        %801 = vmatprep.subr.bf16.mxu0 %v664
        %802 = vmatpush1.bf16.msra.mxu0 %v663
        %803 = vmatprep.subr.bf16.mxu0 %v662
        %804 = vmatpush1.bf16.msra.mxu0 %v661
        %805 = vmatprep.subr.bf16.mxu0 %v692
        %806 = vmatpush2.bf16.msra.mxu0 %v691
        %807 = vmatprep.subr.bf16.mxu0 %v690
        %808 = vmatpush2.bf16.msra.mxu0 %v689
        %809 = vmatprep.subr.bf16.mxu0 %v688
        %810 = vmatpush2.bf16.msra.mxu0 %v687
        %811 = vmatprep.subr.bf16.mxu0 %v686
        %812 = vmatpush2.bf16.msra.mxu0 %v685
        %813 = vmatprep.subr.bf16.mxu0 %v684
        %814 = vmatpush2.bf16.msra.mxu0 %v683
        %815 = vmatprep.subr.bf16.mxu0 %v682
        %816 = vmatpush2.bf16.msra.mxu0 %v681
        %817 = vmatprep.subr.bf16.mxu0 %v680
        %818 = vmatpush2.bf16.msra.mxu0 %v679
        %819 = vmatprep.subr.bf16.mxu0 %v678
        %820 = vmatpush2.bf16.msra.mxu0 %v677
        %821 = vmatprep.mubr.bf16.mxu0 %v454
        %822 = vmatmul.mubr.bf16.gmra.mxu0 %v453
        %v823 = vpop.f32.mrf.mxu0
        %v824 = vadd.f32 %v422, %v823
        %v825 = vpop.f32.mrf.mxu0
        %v826 = vadd.f32 %v426, %v825
        %v827 = vpop.f32.mrf.mxu0
        %v828 = vadd.f32 %v422, %v827
        %v829 = vpop.f32.mrf.mxu0
        %v830 = vadd.f32 %v426, %v829
        %831 = vmatprep.mubr.bf16.mxu0 %v458
        %832 = vmatmul.mubr.bf16.gmra.mxu0 %v457
        %v833 = vpop.f32.mrf.mxu0
        %v834 = vadd.f32 %v422, %v833
        %v835 = vpop.f32.mrf.mxu0
        %v836 = vadd.f32 %v426, %v835
        %v837 = vpop.f32.mrf.mxu0
        %v838 = vadd.f32 %v422, %v837
        %v839 = vpop.f32.mrf.mxu0
        %v840 = vadd.f32 %v426, %v839
        %841 = vdwg.mxu0
        %842 = vmatprep.subr.bf16.mxu0 %v708
        %843 = vmatpush1.bf16.msra.mxu0 %v707
        %844 = vmatprep.subr.bf16.mxu0 %v706
        %845 = vmatpush1.bf16.msra.mxu0 %v705
        %846 = vmatprep.subr.bf16.mxu0 %v704
        %847 = vmatpush1.bf16.msra.mxu0 %v703
        %848 = vmatprep.subr.bf16.mxu0 %v702
        %849 = vmatpush1.bf16.msra.mxu0 %v701
        %850 = vmatprep.subr.bf16.mxu0 %v700
        %851 = vmatpush1.bf16.msra.mxu0 %v699
        %852 = vmatprep.subr.bf16.mxu0 %v698
        %853 = vmatpush1.bf16.msra.mxu0 %v697
        %854 = vmatprep.subr.bf16.mxu0 %v696
        %855 = vmatpush1.bf16.msra.mxu0 %v695
        %856 = vmatprep.subr.bf16.mxu0 %v694
        %857 = vmatpush1.bf16.msra.mxu0 %v693
        %858 = vmatprep.subr.bf16.mxu0 %v724
        %859 = vmatpush2.bf16.msra.mxu0 %v723
        %860 = vmatprep.subr.bf16.mxu0 %v722
        %861 = vmatpush2.bf16.msra.mxu0 %v721
        %862 = vmatprep.subr.bf16.mxu0 %v720
        %863 = vmatpush2.bf16.msra.mxu0 %v719
        %864 = vmatprep.subr.bf16.mxu0 %v718
        %865 = vmatpush2.bf16.msra.mxu0 %v717
        %866 = vmatprep.subr.bf16.mxu0 %v716
        %867 = vmatpush2.bf16.msra.mxu0 %v715
        %868 = vmatprep.subr.bf16.mxu0 %v714
        %869 = vmatpush2.bf16.msra.mxu0 %v713
        %870 = vmatprep.subr.bf16.mxu0 %v712
        %871 = vmatpush2.bf16.msra.mxu0 %v711
        %872 = vmatprep.subr.bf16.mxu0 %v710
        %873 = vmatpush2.bf16.msra.mxu0 %v709
        %874 = vmatprep.mubr.bf16.mxu0 %v456
        %875 = vmatmul.mubr.bf16.gmra.mxu0 %v455
        %v876 = vpop.f32.mrf.mxu0
        %v877 = vadd.f32 %v824, %v876
        %v878 = vpop.f32.mrf.mxu0
        %v879 = vadd.f32 %v826, %v878
        %v880 = vpop.f32.mrf.mxu0
        %v881 = vadd.f32 %v828, %v880
        %v882 = vpop.f32.mrf.mxu0
        %v883 = vadd.f32 %v830, %v882
        %884 = vmatprep.mubr.bf16.mxu0 %v460
        %885 = vmatmul.mubr.bf16.gmra.mxu0 %v459
        %v886 = vpop.f32.mrf.mxu0
        %v887 = vadd.f32 %v834, %v886
        %v888 = vpop.f32.mrf.mxu0
        %v889 = vadd.f32 %v836, %v888
        %v890 = vpop.f32.mrf.mxu0
        %v891 = vadd.f32 %v838, %v890
        %v892 = vpop.f32.mrf.mxu0
        %v893 = vadd.f32 %v840, %v892
        %894 = vdwg.mxu0
        %v895 = vmul.f32 %v877, 0.5
        %v896 = vmul.f32 %v879, 0.5
        %v897 = vmul.f32 %v881, 0.5
        %v898 = vmul.f32 %v883, 0.5
        %v899 = vmul.f32 %v887, 0.5
        %v900 = vmul.f32 %v889, 0.5
        %v901 = vmul.f32 %v891, 0.5
        %v902 = vmul.f32 %v893, 0.5
        %v903 = vmul.f32 %v877, 0.70710677
        %v904 = vmul.f32 %v879, 0.70710677
        %v905 = vmul.f32 %v881, 0.70710677
        %v906 = vmul.f32 %v883, 0.70710677
        %v907 = vmul.f32 %v887, 0.70710677
        %v908 = vmul.f32 %v889, 0.70710677
        %v909 = vmul.f32 %v891, 0.70710677
        %v910 = vmul.f32 %v893, 0.70710677
        %v911 = verf.f32.pop %v903
        %v912 = verf.f32.pop %v904
        %v913 = verf.f32.pop %v905
        %v914 = verf.f32.pop %v906
        %v915 = verf.f32.pop %v907
        %v916 = verf.f32.pop %v908
        %v917 = verf.f32.pop %v909
        %v918 = verf.f32.pop %v910
        %v919 = vadd.f32 %v911, 1.0
        %v920 = vadd.f32 %v912, 1.0
        %v921 = vadd.f32 %v913, 1.0
        %v922 = vadd.f32 %v914, 1.0
        %v923 = vadd.f32 %v915, 1.0
        %v924 = vadd.f32 %v916, 1.0
        %v925 = vadd.f32 %v917, 1.0
        %v926 = vadd.f32 %v918, 1.0
        %v927 = vmul.f32 %v895, %v919
        %v928 = vmul.f32 %v896, %v920
        %v929 = vmul.f32 %v897, %v921
        %v930 = vmul.f32 %v898, %v922
        %v931 = vmul.f32 %v899, %v923
        %v932 = vmul.f32 %v900, %v924
        %v933 = vmul.f32 %v901, %v925
        %v934 = vmul.f32 %v902, %v926
        %v935 = vpack.c.bf16 %v929, %v927
        %v936 = vpack.c.bf16 %v930, %v928
        %v937 = vpack.c.bf16 %v933, %v931
        %v938 = vpack.c.bf16 %v934, %v932
        %v939 = vld [vmem:[#allocation7] sm:$0xf]
        %v940 = vld [vmem:[#allocation7 + $0x4] sm:$0xf]
        %v941 = vld [vmem:[#allocation7 + $0x8] sm:$0xf]
        %v942 = vld [vmem:[#allocation7 + $0xc] sm:$0xf]
        %v943 = vld [vmem:[#allocation7 + $0x10] sm:$0xf]
        %v944 = vld [vmem:[#allocation7 + $0x14] sm:$0xf]
        %v945 = vld [vmem:[#allocation7 + $0x18] sm:$0xf]
        %v946 = vld [vmem:[#allocation7 + $0x1c] sm:$0xf]
        %v947 = vld [vmem:[#allocation7 + $0x20] sm:$0xf]
        %v948 = vld [vmem:[#allocation7 + $0x24] sm:$0xf]
        %v949 = vld [vmem:[#allocation7 + $0x28] sm:$0xf]
        %v950 = vld [vmem:[#allocation7 + $0x2c] sm:$0xf]
        %v951 = vld [vmem:[#allocation7 + $0x30] sm:$0xf]
        %v952 = vld [vmem:[#allocation7 + $0x34] sm:$0xf]
        %v953 = vld [vmem:[#allocation7 + $0x38] sm:$0xf]
        %v954 = vld [vmem:[#allocation7 + $0x3c] sm:$0xf]
        %v955 = vld [vmem:[#allocation7 + $0x40] sm:$0xf]
        %v956 = vld [vmem:[#allocation7 + $0x44] sm:$0xf]
        %v957 = vld [vmem:[#allocation7 + $0x48] sm:$0xf]
        %v958 = vld [vmem:[#allocation7 + $0x4c] sm:$0xf]
        %v959 = vld [vmem:[#allocation7 + $0x50] sm:$0xf]
        %v960 = vld [vmem:[#allocation7 + $0x54] sm:$0xf]
        %v961 = vld [vmem:[#allocation7 + $0x58] sm:$0xf]
        %v962 = vld [vmem:[#allocation7 + $0x5c] sm:$0xf]
        %v963 = vld [vmem:[#allocation7 + $0x60] sm:$0xf]
        %v964 = vld [vmem:[#allocation7 + $0x64] sm:$0xf]
        %v965 = vld [vmem:[#allocation7 + $0x68] sm:$0xf]
        %v966 = vld [vmem:[#allocation7 + $0x6c] sm:$0xf]
        %v967 = vld [vmem:[#allocation7 + $0x70] sm:$0xf]
        %v968 = vld [vmem:[#allocation7 + $0x74] sm:$0xf]
        %v969 = vld [vmem:[#allocation7 + $0x78] sm:$0xf]
        %v970 = vld [vmem:[#allocation7 + $0x7c] sm:$0xf]
        %v971 = vld [vmem:[%s4] sm:$0x1]
        %v973 = vlaneseq
        %v974 = vshrl.u32 %v973, 7
        %v975 = vsub.s32 0, %v974
        %v976 = vrot.slane %v971, %v975
        %v1010 = vunpack.c.l.b16 %v939
        %v1011 = vunpack.c.l.b16 %v940
        %v1012 = vunpack.c.l.b16 %v941
        %v1013 = vunpack.c.l.b16 %v942
        %v1014 = vunpack.c.l.b16 %v943
        %v1015 = vunpack.c.l.b16 %v944
        %v1016 = vunpack.c.l.b16 %v945
        %v1017 = vunpack.c.l.b16 %v946
        %v1018 = vunpack.c.l.b16 %v947
        %v1019 = vunpack.c.l.b16 %v948
        %v1020 = vunpack.c.l.b16 %v949
        %v1021 = vunpack.c.l.b16 %v950
        %v1022 = vunpack.c.l.b16 %v951
        %v1023 = vunpack.c.l.b16 %v952
        %v1024 = vunpack.c.l.b16 %v953
        %v1025 = vunpack.c.l.b16 %v954
        %v1026 = vunpack.c.l.b16 %v955
        %v1027 = vunpack.c.l.b16 %v956
        %v1028 = vunpack.c.l.b16 %v957
        %v1029 = vunpack.c.l.b16 %v958
        %v1030 = vunpack.c.l.b16 %v959
        %v1031 = vunpack.c.l.b16 %v960
        %v1032 = vunpack.c.l.b16 %v961
        %v1033 = vunpack.c.l.b16 %v962
        %v1034 = vunpack.c.l.b16 %v963
        %v1035 = vunpack.c.l.b16 %v964
        %v1036 = vunpack.c.l.b16 %v965
        %v1037 = vunpack.c.l.b16 %v966
        %v1038 = vunpack.c.l.b16 %v967
        %v1039 = vunpack.c.l.b16 %v968
        %v1040 = vunpack.c.l.b16 %v969
        %v1041 = vunpack.c.l.b16 %v970
        %v1042 = vpack.c.b16 %v1011, %v1010
        %v1043 = vpack.c.b16 %v1013, %v1012
        %v1044 = vpack.c.b16 %v1015, %v1014
        %v1045 = vpack.c.b16 %v1017, %v1016
        %v1046 = vpack.c.b16 %v1019, %v1018
        %v1047 = vpack.c.b16 %v1021, %v1020
        %v1048 = vpack.c.b16 %v1023, %v1022
        %v1049 = vpack.c.b16 %v1025, %v1024
        %v1050 = vpack.c.b16 %v1027, %v1026
        %v1051 = vpack.c.b16 %v1029, %v1028
        %v1052 = vpack.c.b16 %v1031, %v1030
        %v1053 = vpack.c.b16 %v1033, %v1032
        %v1054 = vpack.c.b16 %v1035, %v1034
        %v1055 = vpack.c.b16 %v1037, %v1036
        %v1056 = vpack.c.b16 %v1039, %v1038
        %v1057 = vpack.c.b16 %v1041, %v1040
        %1074 = vmatprep.subr.bf16.mxu0 0
        %1075 = vmatpush1.bf16.msra.mxu0 %v1049
        %1076 = vmatprep.subr.bf16.mxu0 0
        %1077 = vmatpush1.bf16.msra.mxu0 %v1048
        %1078 = vmatprep.subr.bf16.mxu0 0
        %1079 = vmatpush1.bf16.msra.mxu0 %v1047
        %1080 = vmatprep.subr.bf16.mxu0 0
        %1081 = vmatpush1.bf16.msra.mxu0 %v1046
        %1082 = vmatprep.subr.bf16.mxu0 0
        %1083 = vmatpush1.bf16.msra.mxu0 %v1045
        %1084 = vmatprep.subr.bf16.mxu0 0
        %1085 = vmatpush1.bf16.msra.mxu0 %v1044
        %1086 = vmatprep.subr.bf16.mxu0 0
        %1087 = vmatpush1.bf16.msra.mxu0 %v1043
        %1088 = vmatprep.subr.bf16.mxu0 0
        %1089 = vmatpush1.bf16.msra.mxu0 %v1042
        %1090 = vmatprep.subr.bf16.mxu0 0
        %1091 = vmatpush2.bf16.msra.mxu0 %v1057
        %1092 = vmatprep.subr.bf16.mxu0 0
        %1093 = vmatpush2.bf16.msra.mxu0 %v1056
        %1094 = vmatprep.subr.bf16.mxu0 0
        %1095 = vmatpush2.bf16.msra.mxu0 %v1055
        %1096 = vmatprep.subr.bf16.mxu0 0
        %1097 = vmatpush2.bf16.msra.mxu0 %v1054
        %1098 = vmatprep.subr.bf16.mxu0 0
        %1099 = vmatpush2.bf16.msra.mxu0 %v1053
        %1100 = vmatprep.subr.bf16.mxu0 0
        %1101 = vmatpush2.bf16.msra.mxu0 %v1052
        %1102 = vmatprep.subr.bf16.mxu0 0
        %1103 = vmatpush2.bf16.msra.mxu0 %v1051
        %1104 = vmatprep.subr.bf16.mxu0 0
        %1105 = vmatpush2.bf16.msra.mxu0 %v1050
        %1106 = vmatprep.mubr.bf16.mxu0 %v936
        %1107 = vmatmul.mubr.bf16.gmra.mxu0 %v935
        %v1108 = vpop.f32.mrf.mxu0
        %v1109 = vadd.f32 %v976, %v1108
        %v1110 = vpop.f32.mrf.mxu0
        %v1111 = vpop.f32.mrf.mxu0
        %v1112 = vadd.f32 %v976, %v1111
        %v1113 = vpop.f32.mrf.mxu0
        %1114 = vmatprep.mubr.bf16.mxu0 %v938
        %1115 = vmatmul.mubr.bf16.gmra.mxu0 %v937
        %v1116 = vpop.f32.mrf.mxu0
        %v1117 = vadd.f32 %v976, %v1116
        %v1118 = vpop.f32.mrf.mxu0
        %v1119 = vpop.f32.mrf.mxu0
        %v1120 = vadd.f32 %v976, %v1119
        %v1121 = vpop.f32.mrf.mxu0
        %1122 = vdwg.mxu0
        %v1123 = vmul.f32 %v1109, 0.5
        %v1124 = vmul.f32 %v1112, 0.5
        %v1125 = vmul.f32 %v1117, 0.5
        %v1126 = vmul.f32 %v1120, 0.5
        %v1127 = vmul.f32 %v1109, 0.70710677
        %v1128 = vmul.f32 %v1112, 0.70710677
        %v1129 = vmul.f32 %v1117, 0.70710677
        %v1130 = vmul.f32 %v1120, 0.70710677
        %v1131 = verf.f32.pop %v1127
        %v1132 = verf.f32.pop %v1128
        %v1133 = verf.f32.pop %v1129
        %v1134 = verf.f32.pop %v1130
        %v1135 = vadd.f32 %v1131, 1.0
        %v1136 = vadd.f32 %v1132, 1.0
        %v1137 = vadd.f32 %v1133, 1.0
        %v1138 = vadd.f32 %v1134, 1.0
        %v1139 = vmul.f32 %v1123, %v1135
        %v1140 = vmul.f32 %v1124, %v1136
        %v1141 = vmul.f32 %v1125, %v1137
        %v1142 = vmul.f32 %v1126, %v1138
        %v1143 = vpack.c.bf16 %v1140, %v1139
        %v1144 = vpack.c.bf16 %v1142, %v1141
        %v1145 = vld [vmem:[#allocation8] sm:$0xff]
        %v1146 = vld [vmem:[#allocation8 + $0x8] sm:$0xff]
        %v1147 = vld [vmem:[#allocation8 + $0x10] sm:$0xff]
        %v1148 = vld [vmem:[#allocation8 + $0x18] sm:$0xff]
        %v1149 = vld [vmem:[#allocation8 + $0x20] sm:$0xff]
        %v1150 = vld [vmem:[#allocation8 + $0x28] sm:$0xff]
        %v1151 = vld [vmem:[#allocation8 + $0x30] sm:$0xff]
        %v1152 = vld [vmem:[#allocation8 + $0x38] sm:$0xff]
        %v1153 = vld [vmem:[#allocation8 + $0x40] sm:$0xff]
        %v1154 = vld [vmem:[#allocation8 + $0x48] sm:$0xff]
        %v1155 = vld [vmem:[#allocation8 + $0x50] sm:$0xff]
        %v1156 = vld [vmem:[#allocation8 + $0x58] sm:$0xff]
        %v1157 = vld [vmem:[#allocation8 + $0x60] sm:$0xff]
        %v1158 = vld [vmem:[#allocation8 + $0x68] sm:$0xff]
        %v1159 = vld [vmem:[#allocation8 + $0x70] sm:$0xff]
        %v1160 = vld [vmem:[#allocation8 + $0x78] sm:$0xff]
        %v1161 = vld [vmem:[#allocation8 + $0x80] sm:$0xff]
        %v1162 = vld [vmem:[#allocation8 + $0x88] sm:$0xff]
        %v1163 = vld [vmem:[#allocation8 + $0x90] sm:$0xff]
        %v1164 = vld [vmem:[#allocation8 + $0x98] sm:$0xff]
        %v1165 = vld [vmem:[#allocation8 + $0xa0] sm:$0xff]
        %v1166 = vld [vmem:[#allocation8 + $0xa8] sm:$0xff]
        %v1167 = vld [vmem:[#allocation8 + $0xb0] sm:$0xff]
        %v1168 = vld [vmem:[#allocation8 + $0xb8] sm:$0xff]
        %v1169 = vld [vmem:[#allocation8 + $0xc0] sm:$0xff]
        %v1170 = vld [vmem:[#allocation8 + $0xc8] sm:$0xff]
        %v1171 = vld [vmem:[#allocation8 + $0xd0] sm:$0xff]
        %v1172 = vld [vmem:[#allocation8 + $0xd8] sm:$0xff]
        %v1173 = vld [vmem:[#allocation8 + $0xe0] sm:$0xff]
        %v1174 = vld [vmem:[#allocation8 + $0xe8] sm:$0xff]
        %v1175 = vld [vmem:[#allocation8 + $0xf0] sm:$0xff]
        %v1176 = vld [vmem:[#allocation8 + $0xf8] sm:$0xff]
        %v1177 = vld [vmem:[%s6] sm:$0xf]
        %v1179 = vlaneseq
        %v1180 = vshrl.u32 %v1179, 7
        %v1181 = vsub.s32 0, %v1180
        %v1182 = vrot.slane %v1177, %v1181
        %v1183 = vlaneseq
        %v1184 = vshrl.u32 %v1183, 7
        %v1185 = vsub.s32 1, %v1184
        %v1186 = vrot.slane %v1177, %v1185
        %v1187 = vlaneseq
        %v1188 = vshrl.u32 %v1187, 7
        %v1189 = vsub.s32 2, %v1188
        %v1190 = vrot.slane %v1177, %v1189
        %v1191 = vlaneseq
        %v1192 = vshrl.u32 %v1191, 7
        %v1193 = vsub.s32 3, %v1192
        %v1194 = vrot.slane %v1177, %v1193
        %v1231 = vunpack.c.l.b16 %v1145
        %v1232 = vunpack.c.h.b16 %v1145
        %v1233 = vunpack.c.l.b16 %v1146
        %v1234 = vunpack.c.h.b16 %v1146
        %v1235 = vunpack.c.l.b16 %v1147
        %v1236 = vunpack.c.h.b16 %v1147
        %v1237 = vunpack.c.l.b16 %v1148
        %v1238 = vunpack.c.h.b16 %v1148
        %v1239 = vunpack.c.l.b16 %v1149
        %v1240 = vunpack.c.h.b16 %v1149
        %v1241 = vunpack.c.l.b16 %v1150
        %v1242 = vunpack.c.h.b16 %v1150
        %v1243 = vunpack.c.l.b16 %v1151
        %v1244 = vunpack.c.h.b16 %v1151
        %v1245 = vunpack.c.l.b16 %v1152
        %v1246 = vunpack.c.h.b16 %v1152
        %v1247 = vunpack.c.l.b16 %v1153
        %v1248 = vunpack.c.h.b16 %v1153
        %v1249 = vunpack.c.l.b16 %v1154
        %v1250 = vunpack.c.h.b16 %v1154
        %v1251 = vunpack.c.l.b16 %v1155
        %v1252 = vunpack.c.h.b16 %v1155
        %v1253 = vunpack.c.l.b16 %v1156
        %v1254 = vunpack.c.h.b16 %v1156
        %v1255 = vunpack.c.l.b16 %v1157
        %v1256 = vunpack.c.h.b16 %v1157
        %v1257 = vunpack.c.l.b16 %v1158
        %v1258 = vunpack.c.h.b16 %v1158
        %v1259 = vunpack.c.l.b16 %v1159
        %v1260 = vunpack.c.h.b16 %v1159
        %v1261 = vunpack.c.l.b16 %v1160
        %v1262 = vunpack.c.h.b16 %v1160
        %v1263 = vunpack.c.l.b16 %v1161
        %v1264 = vunpack.c.h.b16 %v1161
        %v1265 = vunpack.c.l.b16 %v1162
        %v1266 = vunpack.c.h.b16 %v1162
        %v1267 = vunpack.c.l.b16 %v1163
        %v1268 = vunpack.c.h.b16 %v1163
        %v1269 = vunpack.c.l.b16 %v1164
        %v1270 = vunpack.c.h.b16 %v1164
        %v1271 = vunpack.c.l.b16 %v1165
        %v1272 = vunpack.c.h.b16 %v1165
        %v1273 = vunpack.c.l.b16 %v1166
        %v1274 = vunpack.c.h.b16 %v1166
        %v1275 = vunpack.c.l.b16 %v1167
        %v1276 = vunpack.c.h.b16 %v1167
        %v1277 = vunpack.c.l.b16 %v1168
        %v1278 = vunpack.c.h.b16 %v1168
        %v1279 = vunpack.c.l.b16 %v1169
        %v1280 = vunpack.c.h.b16 %v1169
        %v1281 = vunpack.c.l.b16 %v1170
        %v1282 = vunpack.c.h.b16 %v1170
        %v1283 = vunpack.c.l.b16 %v1171
        %v1284 = vunpack.c.h.b16 %v1171
        %v1285 = vunpack.c.l.b16 %v1172
        %v1286 = vunpack.c.h.b16 %v1172
        %v1287 = vunpack.c.l.b16 %v1173
        %v1288 = vunpack.c.h.b16 %v1173
        %v1289 = vunpack.c.l.b16 %v1174
        %v1290 = vunpack.c.h.b16 %v1174
        %v1291 = vunpack.c.l.b16 %v1175
        %v1292 = vunpack.c.h.b16 %v1175
        %v1293 = vunpack.c.l.b16 %v1176
        %v1294 = vunpack.c.h.b16 %v1176
        %v1295 = vpack.c.b16 %v1235, %v1231
        %v1296 = vpack.c.b16 %v1236, %v1232
        %v1297 = vpack.c.b16 %v1237, %v1233
        %v1298 = vpack.c.b16 %v1238, %v1234
        %v1299 = vpack.c.b16 %v1243, %v1239
        %v1300 = vpack.c.b16 %v1244, %v1240
        %v1301 = vpack.c.b16 %v1245, %v1241
        %v1302 = vpack.c.b16 %v1246, %v1242
        %v1303 = vpack.c.b16 %v1251, %v1247
        %v1304 = vpack.c.b16 %v1252, %v1248
        %v1305 = vpack.c.b16 %v1253, %v1249
        %v1306 = vpack.c.b16 %v1254, %v1250
        %v1307 = vpack.c.b16 %v1259, %v1255
        %v1308 = vpack.c.b16 %v1260, %v1256
        %v1309 = vpack.c.b16 %v1261, %v1257
        %v1310 = vpack.c.b16 %v1262, %v1258
        %v1311 = vpack.c.b16 %v1267, %v1263
        %v1312 = vpack.c.b16 %v1268, %v1264
        %v1313 = vpack.c.b16 %v1269, %v1265
        %v1314 = vpack.c.b16 %v1270, %v1266
        %v1315 = vpack.c.b16 %v1275, %v1271
        %v1316 = vpack.c.b16 %v1276, %v1272
        %v1317 = vpack.c.b16 %v1277, %v1273
        %v1318 = vpack.c.b16 %v1278, %v1274
        %v1319 = vpack.c.b16 %v1283, %v1279
        %v1320 = vpack.c.b16 %v1284, %v1280
        %v1321 = vpack.c.b16 %v1285, %v1281
        %v1322 = vpack.c.b16 %v1286, %v1282
        %v1323 = vpack.c.b16 %v1291, %v1287
        %v1324 = vpack.c.b16 %v1292, %v1288
        %v1325 = vpack.c.b16 %v1293, %v1289
        %v1326 = vpack.c.b16 %v1294, %v1290
        %1359 = vmatprep.subr.bf16.mxu0 %v1324
        %1360 = vmatpush1.bf16.msra.mxu0 %v1323
        %1361 = vmatprep.subr.bf16.mxu0 %v1320
        %1362 = vmatpush1.bf16.msra.mxu0 %v1319
        %1363 = vmatprep.subr.bf16.mxu0 %v1316
        %1364 = vmatpush1.bf16.msra.mxu0 %v1315
        %1365 = vmatprep.subr.bf16.mxu0 %v1312
        %1366 = vmatpush1.bf16.msra.mxu0 %v1311
        %1367 = vmatprep.subr.bf16.mxu0 %v1308
        %1368 = vmatpush1.bf16.msra.mxu0 %v1307
        %1369 = vmatprep.subr.bf16.mxu0 %v1304
        %1370 = vmatpush1.bf16.msra.mxu0 %v1303
        %1371 = vmatprep.subr.bf16.mxu0 %v1300
        %1372 = vmatpush1.bf16.msra.mxu0 %v1299
        %1373 = vmatprep.subr.bf16.mxu0 %v1296
        %1374 = vmatpush1.bf16.msra.mxu0 %v1295
        %1375 = vmatprep.subr.bf16.mxu0 0
        %1376 = vmatpush2.bf16.msra.mxu0 0
        %1377 = vmatprep.subr.bf16.mxu0 0
        %1378 = vmatpush2.bf16.msra.mxu0 0
        %1379 = vmatprep.subr.bf16.mxu0 0
        %1380 = vmatpush2.bf16.msra.mxu0 0
        %1381 = vmatprep.subr.bf16.mxu0 0
        %1382 = vmatpush2.bf16.msra.mxu0 0
        %1383 = vmatprep.subr.bf16.mxu0 0
        %1384 = vmatpush2.bf16.msra.mxu0 0
        %1385 = vmatprep.subr.bf16.mxu0 0
        %1386 = vmatpush2.bf16.msra.mxu0 0
        %1387 = vmatprep.subr.bf16.mxu0 0
        %1388 = vmatpush2.bf16.msra.mxu0 0
        %1389 = vmatprep.subr.bf16.mxu0 0
        %1390 = vmatpush2.bf16.msra.mxu0 0
        %1391 = vmatprep.mubr.bf16.mxu0 0
        %1392 = vmatmul.mubr.bf16.gmra.mxu0 %v1143
        %v1393 = vpop.f32.mrf.mxu0
        %v1394 = vadd.f32 %v1182, %v1393
        %v1395 = vpop.f32.mrf.mxu0
        %v1396 = vadd.f32 %v1186, %v1395
        %v1397 = vpop.f32.mrf.mxu0
        %v1398 = vadd.f32 %v1182, %v1397
        %v1399 = vpop.f32.mrf.mxu0
        %v1400 = vadd.f32 %v1186, %v1399
        %1401 = vmatprep.mubr.bf16.mxu0 0
        %1402 = vmatmul.mubr.bf16.gmra.mxu0 %v1144
        %v1403 = vpop.f32.mrf.mxu0
        %v1404 = vadd.f32 %v1182, %v1403
        %v1405 = vpop.f32.mrf.mxu0
        %v1406 = vadd.f32 %v1186, %v1405
        %v1407 = vpop.f32.mrf.mxu0
        %v1408 = vadd.f32 %v1182, %v1407
        %v1409 = vpop.f32.mrf.mxu0
        %v1410 = vadd.f32 %v1186, %v1409
        %1411 = vdwg.mxu0
        %1412 = vmatprep.subr.bf16.mxu0 %v1326
        %1413 = vmatpush1.bf16.msra.mxu0 %v1325
        %1414 = vmatprep.subr.bf16.mxu0 %v1322
        %1415 = vmatpush1.bf16.msra.mxu0 %v1321
        %1416 = vmatprep.subr.bf16.mxu0 %v1318
        %1417 = vmatpush1.bf16.msra.mxu0 %v1317
        %1418 = vmatprep.subr.bf16.mxu0 %v1314
        %1419 = vmatpush1.bf16.msra.mxu0 %v1313
        %1420 = vmatprep.subr.bf16.mxu0 %v1310
        %1421 = vmatpush1.bf16.msra.mxu0 %v1309
        %1422 = vmatprep.subr.bf16.mxu0 %v1306
        %1423 = vmatpush1.bf16.msra.mxu0 %v1305
        %1424 = vmatprep.subr.bf16.mxu0 %v1302
        %1425 = vmatpush1.bf16.msra.mxu0 %v1301
        %1426 = vmatprep.subr.bf16.mxu0 %v1298
        %1427 = vmatpush1.bf16.msra.mxu0 %v1297
        %1428 = vmatprep.subr.bf16.mxu0 0
        %1429 = vmatpush2.bf16.msra.mxu0 0
        %1430 = vmatprep.subr.bf16.mxu0 0
        %1431 = vmatpush2.bf16.msra.mxu0 0
        %1432 = vmatprep.subr.bf16.mxu0 0
        %1433 = vmatpush2.bf16.msra.mxu0 0
        %1434 = vmatprep.subr.bf16.mxu0 0
        %1435 = vmatpush2.bf16.msra.mxu0 0
        %1436 = vmatprep.subr.bf16.mxu0 0
        %1437 = vmatpush2.bf16.msra.mxu0 0
        %1438 = vmatprep.subr.bf16.mxu0 0
        %1439 = vmatpush2.bf16.msra.mxu0 0
        %1440 = vmatprep.subr.bf16.mxu0 0
        %1441 = vmatpush2.bf16.msra.mxu0 0
        %1442 = vmatprep.subr.bf16.mxu0 0
        %1443 = vmatpush2.bf16.msra.mxu0 0
        %1444 = vmatprep.mubr.bf16.mxu0 0
        %1445 = vmatmul.mubr.bf16.gmra.mxu0 %v1143
        %v1446 = vpop.f32.mrf.mxu0
        %v1447 = vadd.f32 %v1190, %v1446
        %v1448 = vpop.f32.mrf.mxu0
        %v1449 = vadd.f32 %v1194, %v1448
        %v1450 = vpop.f32.mrf.mxu0
        %v1451 = vadd.f32 %v1190, %v1450
        %v1452 = vpop.f32.mrf.mxu0
        %v1453 = vadd.f32 %v1194, %v1452
        %1454 = vmatprep.mubr.bf16.mxu0 0
        %1455 = vmatmul.mubr.bf16.gmra.mxu0 %v1144
        %v1456 = vpop.f32.mrf.mxu0
        %v1457 = vadd.f32 %v1190, %v1456
        %v1458 = vpop.f32.mrf.mxu0
        %v1459 = vadd.f32 %v1194, %v1458
        %v1460 = vpop.f32.mrf.mxu0
        %v1461 = vadd.f32 %v1190, %v1460
        %v1462 = vpop.f32.mrf.mxu0
        %v1463 = vadd.f32 %v1194, %v1462
        %1464 = vdwg.mxu0
        %1465 = vst [vmem:[%s341] sm:$0xff] %v1394
        %1466 = vst [vmem:[%s341 + $0x8] sm:$0xff] %v1396
        %1467 = vst [vmem:[%s341 + $0x10] sm:$0xff] %v1447
        %1468 = vst [vmem:[%s341 + $0x18] sm:$0xff] %v1449
        %1469 = vst [vmem:[%s341 + $0x20] sm:$0xff] %v1398
        %1470 = vst [vmem:[%s341 + $0x28] sm:$0xff] %v1400
        %1471 = vst [vmem:[%s341 + $0x30] sm:$0xff] %v1451
        %1472 = vst [vmem:[%s341 + $0x38] sm:$0xff] %v1453
        %1473 = vst [vmem:[%s341 + $0x40] sm:$0xff] %v1404
        %1474 = vst [vmem:[%s341 + $0x48] sm:$0xff] %v1406
        %1475 = vst [vmem:[%s341 + $0x50] sm:$0xff] %v1457
        %1476 = vst [vmem:[%s341 + $0x58] sm:$0xff] %v1459
        %1477 = vst [vmem:[%s341 + $0x60] sm:$0xff] %v1408
        %1478 = vst [vmem:[%s341 + $0x68] sm:$0xff] %v1410
        %1479 = vst [vmem:[%s341 + $0x70] sm:$0xff] %v1461
        %1480 = vst [vmem:[%s341 + $0x78] sm:$0xff] %v1463
        %s1481 = sand.u32 %s186, 1
        %s1482 = scalar_lea.sflag [#allocation4], %s1481
        %s1483 = sand.u32 %s186, 1
        %s1484 = smul.addr %s1483, 128
        %s1485 = scalar_lea.vmem [#allocation10], %s1484
        // Predicated region
        $region65: #{tpu_custom_call.1} parent=47 // pred_check
          %p1486 = pneg %p196
        $region66: #{tpu_custom_call.1} parent=47 // pred_check_branch
          %1488 = sbr.rel (%p1486) target = $region68
        $region67: #{tpu_custom_call.1} parent=47 // pred_region
          %s1489 = smul.u32 4, %s26
          %s1491 = ssub.s32 2048, 2048
          %1492 = vsyncadd %s1482, %s1491
          %s1493 = smul.addr %s1489, 4
          %s1494 = smul.addr %s1493, 128
          %s1495 = scalar_lea.hbm %s7, %s1494
          %s1496 = sshll.u32 %s1485, 4
          %s1497 = int_to_ptr.vmem [resolvable:$true] %s1496
          %1502 = dma.vmem_to_hbm [thread:$0]  %s1497, 2048, %s1495, %s1482, 512, 512, 32
        $region68: #{tpu_custom_call.1} parent=47 // pred_fallthru
          _
      $region48: #{tpu_custom_call.1} parent=5 // pred_fallthru
        _
      %p1503 = scmp.le.s32.totalorder 2, %s21
      // Predicated region
      $region69: #{tpu_custom_call.1} parent=5 // pred_check
        %p1504 = pneg %p1503
      $region70: #{tpu_custom_call.1} parent=5 // pred_check_branch
        %1506 = sbr.rel (%p1504) target = $region72
      $region71: #{tpu_custom_call.1} parent=5 // pred_region
        %s1507 = ssub.s32 %s21, 2
        // Predicated region
        $region73: #{tpu_custom_call.1} parent=71 // pred_check
          %p1508 = pneg %p202
        $region74: #{tpu_custom_call.1} parent=71 // pred_check_branch
          %1510 = sbr.rel (%p1508) target = $region76
        $region75: #{tpu_custom_call.1} parent=71 // pred_region
          %s1511 = sand.u32 %s187, 1
          %s1512 = scalar_lea.sflag [#allocation4], %s1511
          %s1513 = sand.u32 %s187, 1
          %s1514 = smul.addr %s1513, 128
          %s1515 = scalar_lea.vmem [#allocation10], %s1514
          %1516 = dma.done %s1512, 2048
        $region76: #{tpu_custom_call.1} parent=71 // pred_fallthru
          _
      $region72: #{tpu_custom_call.1} parent=5 // pred_fallthru
        _
    $region6: #{tpu_custom_call.1} parent=1 // loop_footer
      %s25 = sadd.s32 1, %s21
    $region7: #{tpu_custom_call.1} parent=1 // loop_footer_branch
      %20 = sbr.rel target = $region3
    $region8: #{tpu_custom_call.1} parent=1 // loop_exit
      _
    %1517 = vsyncpa [#allocation3], 1
    %s1518 = scalar_lea.sflag [#allocation3], 1
    %1519 = vsyncpa %s1518, 1
    %1520 = vsyncpa [#allocation6], 1
    %1521 = vsyncpa [#allocation9], 1
    %1522 = vsyncpa [#allocation4], 1
    %s1523 = scalar_lea.sflag [#allocation4], 1
    %1524 = vsyncpa %s1523, 1

</llo_original>
